<compile_context>
chip_gen: v7x
topology: tpu7x:2x2x1
jax: 0.10.0
libtpu: 0.0.40
codegen_flags: <defaults>
</compile_context>

<pallas_src>
import numpy as np
import jax
import jax.numpy as jnp
from jax.experimental import pallas as pl
from jax.experimental.pallas import tpu as pltpu


def _nearest_exact_src_indices(in_size: int, out_size: int) -> np.ndarray:
    # PyTorch 'nearest-exact': src = clamp(floor((dst + 0.5) * in/out), 0, in-1)
    dst = np.arange(out_size, dtype=np.float64)
    src = np.floor((dst + 0.5) * (float(in_size) / float(out_size)))
    return np.clip(src.astype(np.int64), 0, in_size - 1)


def _selection_matrix(in_sizes, out_sizes) -> np.ndarray:
    """One-hot matrix S of shape (prod(in_sizes), prod(out_sizes)) such that
    out_flat = x_flat @ S implements the nearest-exact gather on the flattened
    spatial dims (kron of the per-dim one-hot selection matrices)."""
    S = np.ones((1, 1), dtype=np.float32)
    for n_in, n_out in zip(in_sizes, out_sizes):
        src = _nearest_exact_src_indices(n_in, n_out)
        A = np.zeros((n_in, n_out), dtype=np.float32)
        A[src, np.arange(n_out)] = 1.0
        S = np.kron(S, A)
    return S


def _resize_kernel(x_ref, s_ref, o_ref):
    """out_block = x_block @ S_block (one-hot selection on the MXU).

    f32 inputs are split exactly into three bf16 parts so the selection stays
    bit-exact while every MXU pass is a plain single-pass bf16 matmul
    (no Precision.HIGHEST, no multi-pass decomposition of the Sel operand).
    """
    s = s_ref[...]                                       # (HW, TNo) bf16 0/1
    x = x_ref[...]                                       # (Nb, HW)
    if x.dtype == jnp.bfloat16:
        acc = jnp.dot(x, s, preferred_element_type=jnp.float32)
    else:
        xf = x.astype(jnp.float32)
        hi = xf.astype(jnp.bfloat16)
        r1 = xf - hi.astype(jnp.float32)                 # exact (Sterbenz)
        mid = r1.astype(jnp.bfloat16)
        lo = (r1 - mid.astype(jnp.float32)).astype(jnp.bfloat16)
        acc = jnp.dot(hi, s, preferred_element_type=jnp.float32)
        acc = acc + jnp.dot(mid, s, preferred_element_type=jnp.float32)
        acc = acc + jnp.dot(lo, s, preferred_element_type=jnp.float32)
    o_ref[...] = acc.astype(o_ref.dtype)


def interpolate_pallas(x: jax.Array, scale_factor: float) -> jax.Array:
    """Equivalent of Interpolate(scale_factor).forward(x) for [B, C, *spatial]."""
    assert x.ndim >= 3, "expected [batch, channels, *spatial]"
    # TODO(synk): resize_tensor's rank-2 input branch (unsqueeze path, which in
    # torch returns the still-unsqueezed tensor) is not wired up.
    lead = x.shape[:2]
    in_spatial = tuple(int(v) for v in x.shape[2:])
    out_spatial = tuple(int(v * scale_factor) for v in in_spatial)  # torch int() truncation

    # resize_tensor early-returns the input when the target shape matches:
    # a no-op must not launch a kernel (zero data movement).
    if out_spatial == in_spatial:
        return x

    N = int(np.prod(lead))
    HW = int(np.prod(in_spatial))
    HWo = int(np.prod(out_spatial))
    out_shape = lead + out_spatial
    itemsize = x.dtype.itemsize

    # Large spatial sizes: the dense kron selection matrix (and its quadratic
    # MXU work) stops making sense -- fall back to a plain XLA gather.
    # TODO(synk): scalar-prefetched gather kernel (PrefetchScalarGridSpec with
    # src_h driving the x BlockSpec index_map) for large-spatial configs.
    if HW * HWo > (8 << 20):
        y = x
        for ax, (n_in, n_out) in enumerate(zip(in_spatial, out_spatial)):
            idx = jnp.asarray(_nearest_exact_src_indices(n_in, n_out))
            y = jnp.take(y, idx, axis=2 + ax)
        return y

    # One-hot kron selection matrix; 0/1 is exact in bf16.
    S = jnp.asarray(_selection_matrix(in_spatial, out_spatial), dtype=jnp.bfloat16)
    x2 = x.reshape(N, HW)          # contiguous metadata reshape (free, outside kernel)

    # Row-block size: batch many (b, c) slices per grid step (sublane dim a
    # multiple of 8, or the full N when N is tiny).
    if N <= 8:
        Nb = N
    else:
        Nb = min(256, (N // 8) * 8)

    # Column tile: lane-dense (multiple of 128) output blocks; capping at 512
    # keeps the grid >= 2 steps even for tiny N (v7x: shard across both TCs)
    # and bounds the Sel block VMEM footprint.
    TNo = HWo if HWo <= 512 else 512

    # Size the (double-buffered) blocks against a VMEM budget; v7x's 64 MiB
    # physical VMEM is the binding constraint.
    VMEM_BUDGET = 40 << 20

    def _block_bytes(nb):
        return (2 * nb * HW * itemsize          # x blocks (double buffered)
                + 2 * nb * TNo * itemsize       # out blocks
                + 2 * HW * TNo * 2              # bf16 Sel blocks
                + 4 * nb * HW * 2               # in-kernel bf16 split temporaries
                + nb * TNo * 4)                 # f32 accumulator
    while Nb > 8 and _block_bytes(Nb) > VMEM_BUDGET:
        Nb -= 8

    grid = (pl.cdiv(N, Nb), pl.cdiv(HWo, TNo))

    passes = 1 if x.dtype == jnp.bfloat16 else 3
    cost = pl.CostEstimate(
        flops=2 * N * HW * HWo * passes,
        transcendentals=0,
        bytes_accessed=(N * HW + N * HWo) * itemsize + HW * HWo * 2)

    out = pl.pallas_call(
        _resize_kernel,
        out_shape=jax.ShapeDtypeStruct((N, HWo), x.dtype),
        grid=grid,
        in_specs=[
            pl.BlockSpec((Nb, HW), lambda n, j: (n, 0)),    # x row slab (invariant in j)
            pl.BlockSpec((HW, TNo), lambda n, j: (0, j)),   # Sel column slab
        ],
        out_specs=pl.BlockSpec((Nb, TNo), lambda n, j: (n, j)),
        compiler_params=pltpu.CompilerParams(
            dimension_semantics=("parallel", "parallel"),
            vmem_limit_bytes=48 << 20),
        cost_estimate=cost,
    )(x2, S)

    return out.reshape(out_shape)


def _ref_nearest_exact(x: jax.Array, scale_factor: float) -> jax.Array:
    """Pure-JAX reference: same src-index formula as torch 'nearest-exact'."""
    y = x
    for ax, n_in in enumerate(x.shape[2:]):
        n_out = int(n_in * scale_factor)
        idx = jnp.asarray(_nearest_exact_src_indices(n_in, n_out))
        y = jnp.take(y, idx, axis=2 + ax)
    return y


if __name__ == "__main__":
    key = jax.random.PRNGKey(0)
    x = jax.random.normal(key, (2, 4, 16, 16), dtype=jnp.float32)

    # Interpolate(scale_factor=2.0): (2, 4, 16, 16) -> (2, 4, 32, 32)
    out = jax.block_until_ready(interpolate_pallas(x, 2.0))
    ref = _ref_nearest_exact(x, 2.0)
    assert out.shape == (2, 4, 32, 32), out.shape
    assert out.dtype == x.dtype
    err = float(jnp.max(jnp.abs(out - ref)))
    assert err <= 1e-6, f"scale=2.0 max abs err {err}"

    # Non-integer scale (exercises ragged column tiles): -> (2, 4, 24, 24)
    out15 = jax.block_until_ready(interpolate_pallas(x, 1.5))
    ref15 = _ref_nearest_exact(x, 1.5)
    assert out15.shape == (2, 4, 24, 24), out15.shape
    err15 = float(jnp.max(jnp.abs(out15 - ref15)))
    assert err15 <= 1e-6, f"scale=1.5 max abs err {err15}"

    # Identity path (scale 1.0): resize_tensor early-returns the input,
    # no kernel launch, no data movement.
    same = interpolate_pallas(x, 1.0)
    assert same.shape == x.shape and bool(jnp.all(same == x))

    print("KERNEL_OK")
</pallas_src>

<mosaic_0001>
module attributes {stable_mosaic.version = 11 : i64} {
  func.func @_resize_kernel(%arg0: i32, %arg1: i32, %arg2: memref<8x256xf32, #tpu.memory_space<vmem>>, %arg3: memref<256x512xbf16, #tpu.memory_space<vmem>>, %arg4: memref<8x512xf32, #tpu.memory_space<vmem>>) attributes {dimension_semantics = [#tpu.dimension_semantics<parallel>, #tpu.dimension_semantics<parallel>], iteration_bounds = array<i64: 1, 2>, scalar_prefetch = 0 : i64, scratch_operands = 0 : i64, tpu.core_type = #tpu.core_type<tc>, window_params = [{transform_indices = @transform_0, window_bounds = array<i64: 8, 256>}, {transform_indices = @transform_1, window_bounds = array<i64: 256, 512>}, {transform_indices = @transform_2, window_bounds = array<i64: 8, 512>}]} {
    %c0 = arith.constant 0 : index
    %c0_0 = arith.constant 0 : index
    %0 = vector.load %arg3[%c0, %c0_0] : memref<256x512xbf16, #tpu.memory_space<vmem>>, vector<256x512xbf16>
    %c0_1 = arith.constant 0 : index
    %c0_2 = arith.constant 0 : index
    %1 = vector.load %arg2[%c0_1, %c0_2] : memref<8x256xf32, #tpu.memory_space<vmem>>, vector<8x256xf32>
    %2 = arith.truncf %1 : vector<8x256xf32> to vector<8x256xbf16>
    %3 = arith.extf %2 : vector<8x256xbf16> to vector<8x256xf32>
    %4 = arith.subf %1, %3 : vector<8x256xf32>
    %5 = arith.truncf %4 : vector<8x256xf32> to vector<8x256xbf16>
    %6 = arith.extf %5 : vector<8x256xbf16> to vector<8x256xf32>
    %7 = arith.subf %4, %6 : vector<8x256xf32>
    %8 = arith.truncf %7 : vector<8x256xf32> to vector<8x256xbf16>
    %cst = arith.constant dense<0.000000e+00> : vector<8x512xf32>
    %9 = tpu.matmul %2, %0, %cst {dimension_numbers = #tpu.dot_dimension_numbers<[1], [0], [0], [1], [0, 0, 1, 1], [], []>} : vector<8x256xbf16>, vector<256x512xbf16>, vector<8x512xf32> -> vector<8x512xf32>
    %cst_3 = arith.constant dense<0.000000e+00> : vector<8x512xf32>
    %10 = tpu.matmul %5, %0, %cst_3 {dimension_numbers = #tpu.dot_dimension_numbers<[1], [0], [0], [1], [0, 0, 1, 1], [], []>} : vector<8x256xbf16>, vector<256x512xbf16>, vector<8x512xf32> -> vector<8x512xf32>
    %11 = arith.addf %9, %10 : vector<8x512xf32>
    %cst_4 = arith.constant dense<0.000000e+00> : vector<8x512xf32>
    %12 = tpu.matmul %8, %0, %cst_4 {dimension_numbers = #tpu.dot_dimension_numbers<[1], [0], [0], [1], [0, 0, 1, 1], [], []>} : vector<8x256xbf16>, vector<256x512xbf16>, vector<8x512xf32> -> vector<8x512xf32>
    %13 = arith.addf %11, %12 : vector<8x512xf32>
    %c0_5 = arith.constant 0 : index
    %c0_6 = arith.constant 0 : index
    %14 = vector.load %arg4[%c0_5, %c0_6] : memref<8x512xf32, #tpu.memory_space<vmem>>, vector<8x512xf32>
    tpu.vector_store %arg4[%c0_5, %c0_6], %13 {strides = array<i32>} : memref<8x512xf32, #tpu.memory_space<vmem>>, vector<8x512xf32>,
    return
  }
  func.func @transform_0(%arg0: i32, %arg1: i32) -> (i32, i32) {
    %c0_i32 = arith.constant 0 : i32
    %c0_i32_0 = arith.constant 0 : i32
    return %arg0, %c0_i32 : i32, i32
  }
  func.func @transform_1(%arg0: i32, %arg1: i32) -> (i32, i32) {
    %c0_i32 = arith.constant 0 : i32
    %c0_i32_0 = arith.constant 0 : i32
    return %c0_i32, %arg1 : i32, i32
  }
  func.func @transform_2(%arg0: i32, %arg1: i32) -> (i32, i32) {
    %c0_i32 = arith.constant 0 : i32
    return %arg0, %arg1 : i32, i32
  }
}

</mosaic_0001>

<llo_original>
// kernel: tpu_custom_call.1
$region0: #{tpu_custom_call.1}
  #allocation0 [shape = 'u32[]', space=smem, size = 0x4, offset = 0x4, fixed_abs, tag = 'smem constant byte address 0x4 - core index']
  #allocation1 [shape = 'u32[144,128]{1,0:T(1,128)}', space=vmem, size = 0x12000, scoped, tag = 'internal scratch']
  %s0 = inlined_call_operand.hbm [shape: f32[8,256], index: 0, kind: input, shape index: {}]
  %s1 = inlined_call_operand.hbm [shape: bf16[256,1024], index: 1, kind: input, shape index: {}]
  %s2 = inlined_call_operand.hbm [shape: f32[8,1024], index: 2, kind: output, shape index: {}]
  %s3 = sld [smem:[#allocation0]]
  $region49: #{tpu_custom_call.1} parent=0
    _
  %s5 = ssub.s32 1, %s3
  %s6 = scalar_select 0, %s5, %s3
  $region1: #{tpu_custom_call.1} parent=0
    #allocation2 [shape = 'u8[8192]{0}', space=vmem, size = 0x2000, scoped, tag = 'input window, operand 0, single buffered']
    #allocation3 [shape = 's32[2]{0}', space=sflag, size = 0x8, scoped, tag = 'scoped memory for tpu_custom_call.1']
    #allocation4 [shape = 's32[2]{0}', space=sflag, size = 0x8, scoped, tag = 'scoped memory for tpu_custom_call.1']
    #allocation5 [shape = 'u8[524288]{0}', space=vmem, size = 0x80000, scoped, tag = 'input window, operand 1']
    #allocation6 [shape = 's32[2]{0}', space=sflag, size = 0x8, scoped, tag = 'scoped memory for tpu_custom_call.1']
    #allocation7 [shape = 'u8[32768]{0}', space=vmem, size = 0x8000, scoped, tag = 'output window, operand 0']
    %7 = vsyncpa [#allocation3], 0
    %8 = vsyncpa [#allocation6], 0
    %s9 = scalar_lea.sflag [#allocation6], 1
    %10 = vsyncpa %s9, 0
    %11 = vsyncpa [#allocation4], 0
    %s12 = scalar_lea.sflag [#allocation4], 1
    %13 = vsyncpa %s12, 0
    loop: start=0, step=1, limit=4
    $region2: #{tpu_custom_call.1} parent=1 // loop_pre_header
      _
    $region3: #{tpu_custom_call.1} parent=1 // loop_header
      %s15 = sphi 0, %s19
      %p16 = scmp.ge.s32.totalorder %s15, 4
      %s22 = sphi 0, %s34
      %s23 = sphi 0, %s30
      %s24 = sphi 0, %s22
      %s25 = sphi 0, %s23
      %s26 = sphi 0, %s24
      %s27 = sphi 0, %s25
      %s37 = sphi 0, %s39
      %s40 = sphi 0, %s37
      %s41 = sphi 0, %s40
      %s57 = sphi 0, %s41
      %s63 = sphi 0, %s65
      %s66 = sphi 0, %s63
      %s67 = sphi 0, %s66
      %s83 = sphi 0, %s67
      %s91 = sphi 0, %s93
      %s94 = sphi 0, %s91
      %s95 = sphi 0, %s94
      %s111 = sphi 0, %s95
    $region4: #{tpu_custom_call.1} parent=1 // loop_header_branch
      %18 = sbr.rel (%p16) target = $region8
    $region5: #{tpu_custom_call.1} parent=1 // loop_body
      %s20 = ssub.s32 %s15, 1
      %s21 = ssub.s32 %s15, 2
      %s28 = sadd.s32 1, %s23
      %p29 = scmp.ge.s32.totalorder %s28, 2
      %s30 = scalar_select %p29, 0, %s28
      %s31 = sadd.s32 1, %s22
      %s32 = scalar_select %p29, %s31, %s22
      %p33 = scmp.ge.s32.totalorder %s32, 1
      %s34 = scalar_select %p33, 0, %s32
      %s35 = ssub.s32 %s22, %s34
      %p36 = scmp.eq.s32.totalorder %s35, 0
      %s38 = sadd.s32 %s37, 1
      %s39 = scalar_select %p36, %s37, %s38
      %p42 = pneg %p36
      %p43 = scmp.eq.s32.totalorder %s15, 1
      %p44 = por %p42, %p43
      %p45 = scmp.ne.s32.totalorder %s37, %s40
      %p46 = scmp.eq.s32.totalorder %s15, 0
      %p47 = por %p45, %p46
      %p48 = scmp.ne.s32.totalorder %s37, %s40
      %p49 = scmp.eq.s32.totalorder %s20, 1
      %p50 = por %p48, %p49
      %p51 = scmp.ne.s32.totalorder %s40, %s41
      %p52 = scmp.eq.s32.totalorder %s20, 0
      %p53 = por %p51, %p52
      %p54 = scmp.ne.s32.totalorder %s40, %s41
      %p55 = scmp.eq.s32.totalorder %s21, 1
      %p56 = por %p54, %p55
      %p58 = scmp.ne.s32.totalorder %s41, %s57
      %p59 = scmp.eq.s32.totalorder %s21, 0
      %p60 = por %p58, %p59
      %s61 = ssub.s32 %s23, %s30
      %p62 = scmp.eq.s32.totalorder %s61, 0
      %s64 = sadd.s32 %s63, 1
      %s65 = scalar_select %p62, %s63, %s64
      %p68 = pneg %p62
      %p69 = scmp.eq.s32.totalorder %s15, 1
      %p70 = por %p68, %p69
      %p71 = scmp.ne.s32.totalorder %s63, %s66
      %p72 = scmp.eq.s32.totalorder %s15, 0
      %p73 = por %p71, %p72
      %p74 = scmp.ne.s32.totalorder %s63, %s66
      %p75 = scmp.eq.s32.totalorder %s20, 1
      %p76 = por %p74, %p75
      %p77 = scmp.ne.s32.totalorder %s66, %s67
      %p78 = scmp.eq.s32.totalorder %s20, 0
      %p79 = por %p77, %p78
      %p80 = scmp.ne.s32.totalorder %s66, %s67
      %p81 = scmp.eq.s32.totalorder %s21, 1
      %p82 = por %p80, %p81
      %p84 = scmp.ne.s32.totalorder %s67, %s83
      %p85 = scmp.eq.s32.totalorder %s21, 0
      %p86 = por %p84, %p85
      %s87 = ssub.s32 %s22, %s34
      %s88 = ssub.s32 %s23, %s30
      %s89 = sor.u32 %s87, %s88
      %p90 = scmp.eq.s32.totalorder %s89, 0
      %s92 = sadd.s32 %s91, 1
      %s93 = scalar_select %p90, %s91, %s92
      %p96 = pneg %p90
      %p97 = scmp.eq.s32.totalorder %s15, 1
      %p98 = por %p96, %p97
      %p99 = scmp.ne.s32.totalorder %s91, %s94
      %p100 = scmp.eq.s32.totalorder %s15, 0
      %p101 = por %p99, %p100
      %p102 = scmp.ne.s32.totalorder %s91, %s94
      %p103 = scmp.eq.s32.totalorder %s20, 1
      %p104 = por %p102, %p103
      %p105 = scmp.ne.s32.totalorder %s94, %s95
      %p106 = scmp.eq.s32.totalorder %s20, 0
      %p107 = por %p105, %p106
      %p108 = scmp.ne.s32.totalorder %s94, %s95
      %p109 = scmp.eq.s32.totalorder %s21, 1
      %p110 = por %p108, %p109
      %p112 = scmp.ne.s32.totalorder %s95, %s111
      %p113 = scmp.eq.s32.totalorder %s21, 0
      %p114 = por %p112, %p113
      %p115 = scmp.le.s32.totalorder 1, %s15
      %p116 = scmp.lt.s32.totalorder %s15, 3
      %p117 = pnand %p115, %p116
      %p118 = pneg %p117
      // Predicated region
      $region9: #{tpu_custom_call.1} parent=5 // pred_check
        _
      $region10: #{tpu_custom_call.1} parent=5 // pred_check_branch
        %120 = sbr.rel (%p117) target = $region12
      $region11: #{tpu_custom_call.1} parent=5 // pred_region
        %s121 = ssub.s32 %s15, 1
        // Predicated region
        $region13: #{tpu_custom_call.1} parent=11 // pred_check
          %p122 = pneg %p53
        $region14: #{tpu_custom_call.1} parent=11 // pred_check_branch
          %124 = sbr.rel (%p122) target = $region16
        $region15: #{tpu_custom_call.1} parent=11 // pred_region
          %s126 = ssub.s32 256, 256
          %127 = vsyncadd [#allocation3], %s126
          %s128 = smul.addr %s24, 2
          %s129 = smul.addr %s128, 128
          %s130 = scalar_lea.hbm %s0, %s129
          %s132 = sshll.u32 [#allocation2], 4
          %s133 = int_to_ptr.vmem [resolvable:$true] %s132
          %135 = dma.hbm_to_vmem [thread:$0]  %s130, 256, %s133, [#allocation3]
        $region16: #{tpu_custom_call.1} parent=11 // pred_fallthru
          _
      $region12: #{tpu_custom_call.1} parent=5 // pred_fallthru
        _
      %p136 = scmp.lt.s32.totalorder %s15, 2
      // Predicated region
      $region17: #{tpu_custom_call.1} parent=5 // pred_check
        %p137 = pneg %p136
      $region18: #{tpu_custom_call.1} parent=5 // pred_check_branch
        %139 = sbr.rel (%p137) target = $region20
      $region19: #{tpu_custom_call.1} parent=5 // pred_region
        // Predicated region
        $region21: #{tpu_custom_call.1} parent=19 // pred_check
          %p140 = pneg %p73
        $region22: #{tpu_custom_call.1} parent=19 // pred_check_branch
          %142 = sbr.rel (%p140) target = $region24
        $region23: #{tpu_custom_call.1} parent=19 // pred_region
          %s143 = sand.u32 %s63, 1
          %s144 = scalar_lea.sflag [#allocation6], %s143
          %s145 = sand.u32 %s63, 1
          %s146 = smul.addr %s145, 512
          %s147 = scalar_lea.vmem [#allocation5], %s146
          %s148 = smul.u32 4, %s23
          %s150 = ssub.s32 8192, 8192
          %151 = vsyncadd %s144, %s150
          %s152 = smul.addr %s148, 64
          %s153 = scalar_lea.hbm %s1, %s152
          %s154 = sshll.u32 %s147, 4
          %s155 = int_to_ptr.vmem [resolvable:$true] %s154
          %160 = dma.hbm_to_vmem [thread:$0]  %s153, 8192, %s155, %s144, 512, 256, 16
        $region24: #{tpu_custom_call.1} parent=19 // pred_fallthru
          _
      $region20: #{tpu_custom_call.1} parent=5 // pred_fallthru
        _
      %p161 = scmp.le.s32.totalorder 1, %s15
      %p162 = scmp.lt.s32.totalorder %s15, 3
      %p163 = pnand %p161, %p162
      %p164 = pneg %p163
      // Predicated region
      $region25: #{tpu_custom_call.1} parent=5 // pred_check
        _
      $region26: #{tpu_custom_call.1} parent=5 // pred_check_branch
        %166 = sbr.rel (%p163) target = $region28
      $region27: #{tpu_custom_call.1} parent=5 // pred_region
        %s167 = ssub.s32 %s15, 1
        // Predicated region
        $region29: #{tpu_custom_call.1} parent=27 // pred_check
          %p168 = pneg %p53
        $region30: #{tpu_custom_call.1} parent=27 // pred_check_branch
          %170 = sbr.rel (%p168) target = $region32
        $region31: #{tpu_custom_call.1} parent=27 // pred_region
          %171 = dma.done [#allocation3], 256
        $region32: #{tpu_custom_call.1} parent=27 // pred_fallthru
          _
        %s172 = sand.u32 %s66, 1
        %s173 = scalar_lea.sflag [#allocation6], %s172
        %s174 = sand.u32 %s66, 1
        %s175 = smul.addr %s174, 512
        %s176 = scalar_lea.vmem [#allocation5], %s175
        // Predicated region
        $region33: #{tpu_custom_call.1} parent=27 // pred_check
          %p177 = pneg %p79
        $region34: #{tpu_custom_call.1} parent=27 // pred_check_branch
          %179 = sbr.rel (%p177) target = $region36
        $region35: #{tpu_custom_call.1} parent=27 // pred_region
          %180 = dma.done %s173, 8192
        $region36: #{tpu_custom_call.1} parent=27 // pred_fallthru
          _
        %p181 = pneg %p53
        %p182 = pneg %p50
        %s183 = sand.u32 %s66, 1
        %s184 = scalar_lea.sflag [#allocation6], %s183
        %s185 = sand.u32 %s66, 1
        %s186 = smul.addr %s185, 512
        %s187 = scalar_lea.vmem [#allocation5], %s186
        %p188 = pneg %p79
        %p189 = pneg %p76
        %p190 = pneg %p107
        %p191 = pneg %p104
        %s192 = sand.u32 %s94, 1
        %s193 = scalar_lea.sflag [#allocation4], %s192
        %s194 = sand.u32 %s94, 1
        %s195 = smul.addr %s194, 32
        %s196 = scalar_lea.vmem [#allocation7], %s195
        %s197 = smul.u32 4, %s25
        %s198 = smul.u32 4, %s25
        %v199 = vld [vmem:[%s176] sm:$0xff]
        %v200 = vld [vmem:[%s176 + $0x8] sm:$0xff]
        %v201 = vld [vmem:[%s176 + $0x10] sm:$0xff]
        %v202 = vld [vmem:[%s176 + $0x18] sm:$0xff]
        %v203 = vld [vmem:[%s176 + $0x20] sm:$0xff]
        %v204 = vld [vmem:[%s176 + $0x28] sm:$0xff]
        %v205 = vld [vmem:[%s176 + $0x30] sm:$0xff]
        %v206 = vld [vmem:[%s176 + $0x38] sm:$0xff]
        %v207 = vld [vmem:[%s176 + $0x40] sm:$0xff]
        %v208 = vld [vmem:[%s176 + $0x48] sm:$0xff]
        %v209 = vld [vmem:[%s176 + $0x50] sm:$0xff]
        %v210 = vld [vmem:[%s176 + $0x58] sm:$0xff]
        %v211 = vld [vmem:[%s176 + $0x60] sm:$0xff]
        %v212 = vld [vmem:[%s176 + $0x68] sm:$0xff]
        %v213 = vld [vmem:[%s176 + $0x70] sm:$0xff]
        %v214 = vld [vmem:[%s176 + $0x78] sm:$0xff]
        %v215 = vld [vmem:[%s176 + $0x80] sm:$0xff]
        %v216 = vld [vmem:[%s176 + $0x88] sm:$0xff]
        %v217 = vld [vmem:[%s176 + $0x90] sm:$0xff]
        %v218 = vld [vmem:[%s176 + $0x98] sm:$0xff]
        %v219 = vld [vmem:[%s176 + $0xa0] sm:$0xff]
        %v220 = vld [vmem:[%s176 + $0xa8] sm:$0xff]
        %v221 = vld [vmem:[%s176 + $0xb0] sm:$0xff]
        %v222 = vld [vmem:[%s176 + $0xb8] sm:$0xff]
        %v223 = vld [vmem:[%s176 + $0xc0] sm:$0xff]
        %v224 = vld [vmem:[%s176 + $0xc8] sm:$0xff]
        %v225 = vld [vmem:[%s176 + $0xd0] sm:$0xff]
        %v226 = vld [vmem:[%s176 + $0xd8] sm:$0xff]
        %v227 = vld [vmem:[%s176 + $0xe0] sm:$0xff]
        %v228 = vld [vmem:[%s176 + $0xe8] sm:$0xff]
        %v229 = vld [vmem:[%s176 + $0xf0] sm:$0xff]
        %v230 = vld [vmem:[%s176 + $0xf8] sm:$0xff]
        %v231 = vld [vmem:[%s176 + $0x100] sm:$0xff]
        %v232 = vld [vmem:[%s176 + $0x108] sm:$0xff]
        %v233 = vld [vmem:[%s176 + $0x110] sm:$0xff]
        %v234 = vld [vmem:[%s176 + $0x118] sm:$0xff]
        %v235 = vld [vmem:[%s176 + $0x120] sm:$0xff]
        %v236 = vld [vmem:[%s176 + $0x128] sm:$0xff]
        %v237 = vld [vmem:[%s176 + $0x130] sm:$0xff]
        %v238 = vld [vmem:[%s176 + $0x138] sm:$0xff]
        %v239 = vld [vmem:[%s176 + $0x140] sm:$0xff]
        %v240 = vld [vmem:[%s176 + $0x148] sm:$0xff]
        %v241 = vld [vmem:[%s176 + $0x150] sm:$0xff]
        %v242 = vld [vmem:[%s176 + $0x158] sm:$0xff]
        %v243 = vld [vmem:[%s176 + $0x160] sm:$0xff]
        %v244 = vld [vmem:[%s176 + $0x168] sm:$0xff]
        %v245 = vld [vmem:[%s176 + $0x170] sm:$0xff]
        %v246 = vld [vmem:[%s176 + $0x178] sm:$0xff]
        %v247 = vld [vmem:[%s176 + $0x180] sm:$0xff]
        %v248 = vld [vmem:[%s176 + $0x188] sm:$0xff]
        %v249 = vld [vmem:[%s176 + $0x190] sm:$0xff]
        %v250 = vld [vmem:[%s176 + $0x198] sm:$0xff]
        %v251 = vld [vmem:[%s176 + $0x1a0] sm:$0xff]
        %v252 = vld [vmem:[%s176 + $0x1a8] sm:$0xff]
        %v253 = vld [vmem:[%s176 + $0x1b0] sm:$0xff]
        %v254 = vld [vmem:[%s176 + $0x1b8] sm:$0xff]
        %v255 = vld [vmem:[%s176 + $0x1c0] sm:$0xff]
        %v256 = vld [vmem:[%s176 + $0x1c8] sm:$0xff]
        %v257 = vld [vmem:[%s176 + $0x1d0] sm:$0xff]
        %v258 = vld [vmem:[%s176 + $0x1d8] sm:$0xff]
        %v259 = vld [vmem:[%s176 + $0x1e0] sm:$0xff]
        %v260 = vld [vmem:[%s176 + $0x1e8] sm:$0xff]
        %v261 = vld [vmem:[%s176 + $0x1f0] sm:$0xff]
        %v262 = vld [vmem:[%s176 + $0x1f8] sm:$0xff]
        %v263 = vld [vmem:[#allocation2] sm:$0xff]
        %v264 = vld [vmem:[#allocation2 + $0x8] sm:$0xff]
        %v265 = vpack.c.bf16 %v263, %v263
        %v266 = vpack.c.bf16 %v264, %v264
        %v267 = vunpack.c.l.bf16 %v265
        %v268 = vunpack.c.l.bf16 %v266
        %v269 = vsub.f32 %v263, %v267
        %v270 = vsub.f32 %v264, %v268
        %v271 = vpack.c.bf16 %v269, %v269
        %v272 = vpack.c.bf16 %v270, %v270
        %v273 = vunpack.c.l.bf16 %v271
        %v274 = vunpack.c.l.bf16 %v272
        %v275 = vsub.f32 %v269, %v273
        %v276 = vsub.f32 %v270, %v274
        %v277 = vpack.c.bf16 %v275, %v275
        %v278 = vpack.c.bf16 %v276, %v276
        %v343 = vunpack.c.l.b16 %v199
        %v344 = vunpack.c.h.b16 %v199
        %v345 = vunpack.c.l.b16 %v200
        %v346 = vunpack.c.h.b16 %v200
        %v347 = vunpack.c.l.b16 %v201
        %v348 = vunpack.c.h.b16 %v201
        %v349 = vunpack.c.l.b16 %v202
        %v350 = vunpack.c.h.b16 %v202
        %v351 = vunpack.c.l.b16 %v203
        %v352 = vunpack.c.h.b16 %v203
        %v353 = vunpack.c.l.b16 %v204
        %v354 = vunpack.c.h.b16 %v204
        %v355 = vunpack.c.l.b16 %v205
        %v356 = vunpack.c.h.b16 %v205
        %v357 = vunpack.c.l.b16 %v206
        %v358 = vunpack.c.h.b16 %v206
        %v359 = vunpack.c.l.b16 %v207
        %v360 = vunpack.c.h.b16 %v207
        %v361 = vunpack.c.l.b16 %v208
        %v362 = vunpack.c.h.b16 %v208
        %v363 = vunpack.c.l.b16 %v209
        %v364 = vunpack.c.h.b16 %v209
        %v365 = vunpack.c.l.b16 %v210
        %v366 = vunpack.c.h.b16 %v210
        %v367 = vunpack.c.l.b16 %v211
        %v368 = vunpack.c.h.b16 %v211
        %v369 = vunpack.c.l.b16 %v212
        %v370 = vunpack.c.h.b16 %v212
        %v371 = vunpack.c.l.b16 %v213
        %v372 = vunpack.c.h.b16 %v213
        %v373 = vunpack.c.l.b16 %v214
        %v374 = vunpack.c.h.b16 %v214
        %v375 = vunpack.c.l.b16 %v215
        %v376 = vunpack.c.h.b16 %v215
        %v377 = vunpack.c.l.b16 %v216
        %v378 = vunpack.c.h.b16 %v216
        %v379 = vunpack.c.l.b16 %v217
        %v380 = vunpack.c.h.b16 %v217
        %v381 = vunpack.c.l.b16 %v218
        %v382 = vunpack.c.h.b16 %v218
        %v383 = vunpack.c.l.b16 %v219
        %v384 = vunpack.c.h.b16 %v219
        %v385 = vunpack.c.l.b16 %v220
        %v386 = vunpack.c.h.b16 %v220
        %v387 = vunpack.c.l.b16 %v221
        %v388 = vunpack.c.h.b16 %v221
        %v389 = vunpack.c.l.b16 %v222
        %v390 = vunpack.c.h.b16 %v222
        %v391 = vunpack.c.l.b16 %v223
        %v392 = vunpack.c.h.b16 %v223
        %v393 = vunpack.c.l.b16 %v224
        %v394 = vunpack.c.h.b16 %v224
        %v395 = vunpack.c.l.b16 %v225
        %v396 = vunpack.c.h.b16 %v225
        %v397 = vunpack.c.l.b16 %v226
        %v398 = vunpack.c.h.b16 %v226
        %v399 = vunpack.c.l.b16 %v227
        %v400 = vunpack.c.h.b16 %v227
        %v401 = vunpack.c.l.b16 %v228
        %v402 = vunpack.c.h.b16 %v228
        %v403 = vunpack.c.l.b16 %v229
        %v404 = vunpack.c.h.b16 %v229
        %v405 = vunpack.c.l.b16 %v230
        %v406 = vunpack.c.h.b16 %v230
        %v407 = vunpack.c.l.b16 %v231
        %v408 = vunpack.c.h.b16 %v231
        %v409 = vunpack.c.l.b16 %v232
        %v410 = vunpack.c.h.b16 %v232
        %v411 = vunpack.c.l.b16 %v233
        %v412 = vunpack.c.h.b16 %v233
        %v413 = vunpack.c.l.b16 %v234
        %v414 = vunpack.c.h.b16 %v234
        %v415 = vunpack.c.l.b16 %v235
        %v416 = vunpack.c.h.b16 %v235
        %v417 = vunpack.c.l.b16 %v236
        %v418 = vunpack.c.h.b16 %v236
        %v419 = vunpack.c.l.b16 %v237
        %v420 = vunpack.c.h.b16 %v237
        %v421 = vunpack.c.l.b16 %v238
        %v422 = vunpack.c.h.b16 %v238
        %v423 = vunpack.c.l.b16 %v239
        %v424 = vunpack.c.h.b16 %v239
        %v425 = vunpack.c.l.b16 %v240
        %v426 = vunpack.c.h.b16 %v240
        %v427 = vunpack.c.l.b16 %v241
        %v428 = vunpack.c.h.b16 %v241
        %v429 = vunpack.c.l.b16 %v242
        %v430 = vunpack.c.h.b16 %v242
        %v431 = vunpack.c.l.b16 %v243
        %v432 = vunpack.c.h.b16 %v243
        %v433 = vunpack.c.l.b16 %v244
        %v434 = vunpack.c.h.b16 %v244
        %v435 = vunpack.c.l.b16 %v245
        %v436 = vunpack.c.h.b16 %v245
        %v437 = vunpack.c.l.b16 %v246
        %v438 = vunpack.c.h.b16 %v246
        %v439 = vunpack.c.l.b16 %v247
        %v440 = vunpack.c.h.b16 %v247
        %v441 = vunpack.c.l.b16 %v248
        %v442 = vunpack.c.h.b16 %v248
        %v443 = vunpack.c.l.b16 %v249
        %v444 = vunpack.c.h.b16 %v249
        %v445 = vunpack.c.l.b16 %v250
        %v446 = vunpack.c.h.b16 %v250
        %v447 = vunpack.c.l.b16 %v251
        %v448 = vunpack.c.h.b16 %v251
        %v449 = vunpack.c.l.b16 %v252
        %v450 = vunpack.c.h.b16 %v252
        %v451 = vunpack.c.l.b16 %v253
        %v452 = vunpack.c.h.b16 %v253
        %v453 = vunpack.c.l.b16 %v254
        %v454 = vunpack.c.h.b16 %v254
        %v455 = vunpack.c.l.b16 %v255
        %v456 = vunpack.c.h.b16 %v255
        %v457 = vunpack.c.l.b16 %v256
        %v458 = vunpack.c.h.b16 %v256
        %v459 = vunpack.c.l.b16 %v257
        %v460 = vunpack.c.h.b16 %v257
        %v461 = vunpack.c.l.b16 %v258
        %v462 = vunpack.c.h.b16 %v258
        %v463 = vunpack.c.l.b16 %v259
        %v464 = vunpack.c.h.b16 %v259
        %v465 = vunpack.c.l.b16 %v260
        %v466 = vunpack.c.h.b16 %v260
        %v467 = vunpack.c.l.b16 %v261
        %v468 = vunpack.c.h.b16 %v261
        %v469 = vunpack.c.l.b16 %v262
        %v470 = vunpack.c.h.b16 %v262
        %v471 = vpack.c.b16 %v347, %v343
        %v472 = vpack.c.b16 %v348, %v344
        %v473 = vpack.c.b16 %v349, %v345
        %v474 = vpack.c.b16 %v350, %v346
        %v475 = vpack.c.b16 %v355, %v351
        %v476 = vpack.c.b16 %v356, %v352
        %v477 = vpack.c.b16 %v357, %v353
        %v478 = vpack.c.b16 %v358, %v354
        %v479 = vpack.c.b16 %v363, %v359
        %v480 = vpack.c.b16 %v364, %v360
        %v481 = vpack.c.b16 %v365, %v361
        %v482 = vpack.c.b16 %v366, %v362
        %v483 = vpack.c.b16 %v371, %v367
        %v484 = vpack.c.b16 %v372, %v368
        %v485 = vpack.c.b16 %v373, %v369
        %v486 = vpack.c.b16 %v374, %v370
        %v487 = vpack.c.b16 %v379, %v375
        %v488 = vpack.c.b16 %v380, %v376
        %v489 = vpack.c.b16 %v381, %v377
        %v490 = vpack.c.b16 %v382, %v378
        %v491 = vpack.c.b16 %v387, %v383
        %v492 = vpack.c.b16 %v388, %v384
        %v493 = vpack.c.b16 %v389, %v385
        %v494 = vpack.c.b16 %v390, %v386
        %v495 = vpack.c.b16 %v395, %v391
        %v496 = vpack.c.b16 %v396, %v392
        %v497 = vpack.c.b16 %v397, %v393
        %v498 = vpack.c.b16 %v398, %v394
        %v499 = vpack.c.b16 %v403, %v399
        %v500 = vpack.c.b16 %v404, %v400
        %v501 = vpack.c.b16 %v405, %v401
        %v502 = vpack.c.b16 %v406, %v402
        %v503 = vpack.c.b16 %v411, %v407
        %v504 = vpack.c.b16 %v412, %v408
        %v505 = vpack.c.b16 %v413, %v409
        %v506 = vpack.c.b16 %v414, %v410
        %v507 = vpack.c.b16 %v419, %v415
        %v508 = vpack.c.b16 %v420, %v416
        %v509 = vpack.c.b16 %v421, %v417
        %v510 = vpack.c.b16 %v422, %v418
        %v511 = vpack.c.b16 %v427, %v423
        %v512 = vpack.c.b16 %v428, %v424
        %v513 = vpack.c.b16 %v429, %v425
        %v514 = vpack.c.b16 %v430, %v426
        %v515 = vpack.c.b16 %v435, %v431
        %v516 = vpack.c.b16 %v436, %v432
        %v517 = vpack.c.b16 %v437, %v433
        %v518 = vpack.c.b16 %v438, %v434
        %v519 = vpack.c.b16 %v443, %v439
        %v520 = vpack.c.b16 %v444, %v440
        %v521 = vpack.c.b16 %v445, %v441
        %v522 = vpack.c.b16 %v446, %v442
        %v523 = vpack.c.b16 %v451, %v447
        %v524 = vpack.c.b16 %v452, %v448
        %v525 = vpack.c.b16 %v453, %v449
        %v526 = vpack.c.b16 %v454, %v450
        %v527 = vpack.c.b16 %v459, %v455
        %v528 = vpack.c.b16 %v460, %v456
        %v529 = vpack.c.b16 %v461, %v457
        %v530 = vpack.c.b16 %v462, %v458
        %v531 = vpack.c.b16 %v467, %v463
        %v532 = vpack.c.b16 %v468, %v464
        %v533 = vpack.c.b16 %v469, %v465
        %v534 = vpack.c.b16 %v470, %v466
        %599 = vmatprep.subr.bf16.mxu0 %v472
        %600 = vmatpush1.bf16.msra.mxu0 %v471
        %601 = vmatprep.subr.bf16.mxu0 %v476
        %602 = vmatpush1.bf16.msra.mxu0 %v475
        %603 = vmatprep.subr.bf16.mxu0 %v480
        %604 = vmatpush1.bf16.msra.mxu0 %v479
        %605 = vmatprep.subr.bf16.mxu0 %v484
        %606 = vmatpush1.bf16.msra.mxu0 %v483
        %607 = vmatprep.subr.bf16.mxu0 %v488
        %608 = vmatpush1.bf16.msra.mxu0 %v487
        %609 = vmatprep.subr.bf16.mxu0 %v492
        %610 = vmatpush1.bf16.msra.mxu0 %v491
        %611 = vmatprep.subr.bf16.mxu0 %v496
        %612 = vmatpush1.bf16.msra.mxu0 %v495
        %613 = vmatprep.subr.bf16.mxu0 %v500
        %614 = vmatpush1.bf16.msra.mxu0 %v499
        %615 = vmatprep.subr.bf16.mxu0 %v504
        %616 = vmatpush1.bf16.msra.mxu0 %v503
        %617 = vmatprep.subr.bf16.mxu0 %v508
        %618 = vmatpush1.bf16.msra.mxu0 %v507
        %619 = vmatprep.subr.bf16.mxu0 %v512
        %620 = vmatpush1.bf16.msra.mxu0 %v511
        %621 = vmatprep.subr.bf16.mxu0 %v516
        %622 = vmatpush1.bf16.msra.mxu0 %v515
        %623 = vmatprep.subr.bf16.mxu0 %v520
        %624 = vmatpush1.bf16.msra.mxu0 %v519
        %625 = vmatprep.subr.bf16.mxu0 %v524
        %626 = vmatpush1.bf16.msra.mxu0 %v523
        %627 = vmatprep.subr.bf16.mxu0 %v528
        %628 = vmatpush1.bf16.msra.mxu0 %v527
        %629 = vmatprep.subr.bf16.mxu0 %v532
        %630 = vmatpush1.bf16.msra.mxu0 %v531
        %631 = vmatprep.mubr.bf16.mxu0 %v272
        %632 = vmatmul.mubr.bf16.gmra.mrb[0].mxu0 %v271
        %v633 = vpop.f32.mrb[0].mxu0
        %v634 = vadd.f32 0.0, %v633
        %v635 = vpop.f32.mrb[0].mxu0
        %v636 = vadd.f32 0.0, %v635
        %v637 = vpop.f32.mrb[0].mxu0
        %v638 = vpop.f32.mrb[0].mxu0
        %639 = vdwg.mxu0
        %640 = vmatprep.subr.bf16.mxu0 %v474
        %641 = vmatpush1.bf16.msra.mxu0 %v473
        %642 = vmatprep.subr.bf16.mxu0 %v478
        %643 = vmatpush1.bf16.msra.mxu0 %v477
        %644 = vmatprep.subr.bf16.mxu0 %v482
        %645 = vmatpush1.bf16.msra.mxu0 %v481
        %646 = vmatprep.subr.bf16.mxu0 %v486
        %647 = vmatpush1.bf16.msra.mxu0 %v485
        %648 = vmatprep.subr.bf16.mxu0 %v490
        %649 = vmatpush1.bf16.msra.mxu0 %v489
        %650 = vmatprep.subr.bf16.mxu0 %v494
        %651 = vmatpush1.bf16.msra.mxu0 %v493
        %652 = vmatprep.subr.bf16.mxu0 %v498
        %653 = vmatpush1.bf16.msra.mxu0 %v497
        %654 = vmatprep.subr.bf16.mxu0 %v502
        %655 = vmatpush1.bf16.msra.mxu0 %v501
        %656 = vmatprep.subr.bf16.mxu0 %v506
        %657 = vmatpush1.bf16.msra.mxu0 %v505
        %658 = vmatprep.subr.bf16.mxu0 %v510
        %659 = vmatpush1.bf16.msra.mxu0 %v509
        %660 = vmatprep.subr.bf16.mxu0 %v514
        %661 = vmatpush1.bf16.msra.mxu0 %v513
        %662 = vmatprep.subr.bf16.mxu0 %v518
        %663 = vmatpush1.bf16.msra.mxu0 %v517
        %664 = vmatprep.subr.bf16.mxu0 %v522
        %665 = vmatpush1.bf16.msra.mxu0 %v521
        %666 = vmatprep.subr.bf16.mxu0 %v526
        %667 = vmatpush1.bf16.msra.mxu0 %v525
        %668 = vmatprep.subr.bf16.mxu0 %v530
        %669 = vmatpush1.bf16.msra.mxu0 %v529
        %670 = vmatprep.subr.bf16.mxu0 %v534
        %671 = vmatpush1.bf16.msra.mxu0 %v533
        %672 = vmatprep.mubr.bf16.mxu0 %v272
        %673 = vmatmul.mubr.bf16.gmra.mrb[0].mxu0 %v271
        %v674 = vpop.f32.mrb[0].mxu0
        %v675 = vadd.f32 0.0, %v674
        %v676 = vpop.f32.mrb[0].mxu0
        %v677 = vadd.f32 0.0, %v676
        %v678 = vpop.f32.mrb[0].mxu0
        %v679 = vpop.f32.mrb[0].mxu0
        %680 = vdwg.mxu0
        %681 = vmatprep.subr.bf16.mxu0 %v472
        %682 = vmatpush1.bf16.msra.mxu0 %v471
        %683 = vmatprep.subr.bf16.mxu0 %v476
        %684 = vmatpush1.bf16.msra.mxu0 %v475
        %685 = vmatprep.subr.bf16.mxu0 %v480
        %686 = vmatpush1.bf16.msra.mxu0 %v479
        %687 = vmatprep.subr.bf16.mxu0 %v484
        %688 = vmatpush1.bf16.msra.mxu0 %v483
        %689 = vmatprep.subr.bf16.mxu0 %v488
        %690 = vmatpush1.bf16.msra.mxu0 %v487
        %691 = vmatprep.subr.bf16.mxu0 %v492
        %692 = vmatpush1.bf16.msra.mxu0 %v491
        %693 = vmatprep.subr.bf16.mxu0 %v496
        %694 = vmatpush1.bf16.msra.mxu0 %v495
        %695 = vmatprep.subr.bf16.mxu0 %v500
        %696 = vmatpush1.bf16.msra.mxu0 %v499
        %697 = vmatprep.subr.bf16.mxu0 %v504
        %698 = vmatpush1.bf16.msra.mxu0 %v503
        %699 = vmatprep.subr.bf16.mxu0 %v508
        %700 = vmatpush1.bf16.msra.mxu0 %v507
        %701 = vmatprep.subr.bf16.mxu0 %v512
        %702 = vmatpush1.bf16.msra.mxu0 %v511
        %703 = vmatprep.subr.bf16.mxu0 %v516
        %704 = vmatpush1.bf16.msra.mxu0 %v515
        %705 = vmatprep.subr.bf16.mxu0 %v520
        %706 = vmatpush1.bf16.msra.mxu0 %v519
        %707 = vmatprep.subr.bf16.mxu0 %v524
        %708 = vmatpush1.bf16.msra.mxu0 %v523
        %709 = vmatprep.subr.bf16.mxu0 %v528
        %710 = vmatpush1.bf16.msra.mxu0 %v527
        %711 = vmatprep.subr.bf16.mxu0 %v532
        %712 = vmatpush1.bf16.msra.mxu0 %v531
        %713 = vmatprep.mubr.bf16.mxu0 %v266
        %714 = vmatmul.mubr.bf16.gmra.mrb[0].mxu0 %v265
        %v715 = vpop.f32.mrb[0].mxu0
        %v716 = vadd.f32 %v634, %v715
        %v717 = vpop.f32.mrb[0].mxu0
        %v718 = vadd.f32 %v636, %v717
        %v719 = vpop.f32.mrb[0].mxu0
        %v720 = vpop.f32.mrb[0].mxu0
        %721 = vdwg.mxu0
        %722 = vmatprep.subr.bf16.mxu0 %v474
        %723 = vmatpush1.bf16.msra.mxu0 %v473
        %724 = vmatprep.subr.bf16.mxu0 %v478
        %725 = vmatpush1.bf16.msra.mxu0 %v477
        %726 = vmatprep.subr.bf16.mxu0 %v482
        %727 = vmatpush1.bf16.msra.mxu0 %v481
        %728 = vmatprep.subr.bf16.mxu0 %v486
        %729 = vmatpush1.bf16.msra.mxu0 %v485
        %730 = vmatprep.subr.bf16.mxu0 %v490
        %731 = vmatpush1.bf16.msra.mxu0 %v489
        %732 = vmatprep.subr.bf16.mxu0 %v494
        %733 = vmatpush1.bf16.msra.mxu0 %v493
        %734 = vmatprep.subr.bf16.mxu0 %v498
        %735 = vmatpush1.bf16.msra.mxu0 %v497
        %736 = vmatprep.subr.bf16.mxu0 %v502
        %737 = vmatpush1.bf16.msra.mxu0 %v501
        %738 = vmatprep.subr.bf16.mxu0 %v506
        %739 = vmatpush1.bf16.msra.mxu0 %v505
        %740 = vmatprep.subr.bf16.mxu0 %v510
        %741 = vmatpush1.bf16.msra.mxu0 %v509
        %742 = vmatprep.subr.bf16.mxu0 %v514
        %743 = vmatpush1.bf16.msra.mxu0 %v513
        %744 = vmatprep.subr.bf16.mxu0 %v518
        %745 = vmatpush1.bf16.msra.mxu0 %v517
        %746 = vmatprep.subr.bf16.mxu0 %v522
        %747 = vmatpush1.bf16.msra.mxu0 %v521
        %748 = vmatprep.subr.bf16.mxu0 %v526
        %749 = vmatpush1.bf16.msra.mxu0 %v525
        %750 = vmatprep.subr.bf16.mxu0 %v530
        %751 = vmatpush1.bf16.msra.mxu0 %v529
        %752 = vmatprep.subr.bf16.mxu0 %v534
        %753 = vmatpush1.bf16.msra.mxu0 %v533
        %754 = vmatprep.mubr.bf16.mxu0 %v266
        %755 = vmatmul.mubr.bf16.gmra.mrb[0].mxu0 %v265
        %v756 = vpop.f32.mrb[0].mxu0
        %v757 = vadd.f32 %v675, %v756
        %v758 = vpop.f32.mrb[0].mxu0
        %v759 = vadd.f32 %v677, %v758
        %v760 = vpop.f32.mrb[0].mxu0
        %v761 = vpop.f32.mrb[0].mxu0
        %762 = vdwg.mxu0
        %763 = vmatprep.subr.bf16.mxu0 %v472
        %764 = vmatpush1.bf16.msra.mxu0 %v471
        %765 = vmatprep.subr.bf16.mxu0 %v476
        %766 = vmatpush1.bf16.msra.mxu0 %v475
        %767 = vmatprep.subr.bf16.mxu0 %v480
        %768 = vmatpush1.bf16.msra.mxu0 %v479
        %769 = vmatprep.subr.bf16.mxu0 %v484
        %770 = vmatpush1.bf16.msra.mxu0 %v483
        %771 = vmatprep.subr.bf16.mxu0 %v488
        %772 = vmatpush1.bf16.msra.mxu0 %v487
        %773 = vmatprep.subr.bf16.mxu0 %v492
        %774 = vmatpush1.bf16.msra.mxu0 %v491
        %775 = vmatprep.subr.bf16.mxu0 %v496
        %776 = vmatpush1.bf16.msra.mxu0 %v495
        %777 = vmatprep.subr.bf16.mxu0 %v500
        %778 = vmatpush1.bf16.msra.mxu0 %v499
        %779 = vmatprep.subr.bf16.mxu0 %v504
        %780 = vmatpush1.bf16.msra.mxu0 %v503
        %781 = vmatprep.subr.bf16.mxu0 %v508
        %782 = vmatpush1.bf16.msra.mxu0 %v507
        %783 = vmatprep.subr.bf16.mxu0 %v512
        %784 = vmatpush1.bf16.msra.mxu0 %v511
        %785 = vmatprep.subr.bf16.mxu0 %v516
        %786 = vmatpush1.bf16.msra.mxu0 %v515
        %787 = vmatprep.subr.bf16.mxu0 %v520
        %788 = vmatpush1.bf16.msra.mxu0 %v519
        %789 = vmatprep.subr.bf16.mxu0 %v524
        %790 = vmatpush1.bf16.msra.mxu0 %v523
        %791 = vmatprep.subr.bf16.mxu0 %v528
        %792 = vmatpush1.bf16.msra.mxu0 %v527
        %793 = vmatprep.subr.bf16.mxu0 %v532
        %794 = vmatpush1.bf16.msra.mxu0 %v531
        %795 = vmatprep.mubr.bf16.mxu0 %v278
        %796 = vmatmul.mubr.bf16.gmra.mrb[0].mxu0 %v277
        %v797 = vpop.f32.mrb[0].mxu0
        %v798 = vadd.f32 0.0, %v797
        %v799 = vpop.f32.mrb[0].mxu0
        %v800 = vadd.f32 0.0, %v799
        %v801 = vpop.f32.mrb[0].mxu0
        %v802 = vpop.f32.mrb[0].mxu0
        %803 = vdwg.mxu0
        %804 = vmatprep.subr.bf16.mxu0 %v474
        %805 = vmatpush1.bf16.msra.mxu0 %v473
        %806 = vmatprep.subr.bf16.mxu0 %v478
        %807 = vmatpush1.bf16.msra.mxu0 %v477
        %808 = vmatprep.subr.bf16.mxu0 %v482
        %809 = vmatpush1.bf16.msra.mxu0 %v481
        %810 = vmatprep.subr.bf16.mxu0 %v486
        %811 = vmatpush1.bf16.msra.mxu0 %v485
        %812 = vmatprep.subr.bf16.mxu0 %v490
        %813 = vmatpush1.bf16.msra.mxu0 %v489
        %814 = vmatprep.subr.bf16.mxu0 %v494
        %815 = vmatpush1.bf16.msra.mxu0 %v493
        %816 = vmatprep.subr.bf16.mxu0 %v498
        %817 = vmatpush1.bf16.msra.mxu0 %v497
        %818 = vmatprep.subr.bf16.mxu0 %v502
        %819 = vmatpush1.bf16.msra.mxu0 %v501
        %820 = vmatprep.subr.bf16.mxu0 %v506
        %821 = vmatpush1.bf16.msra.mxu0 %v505
        %822 = vmatprep.subr.bf16.mxu0 %v510
        %823 = vmatpush1.bf16.msra.mxu0 %v509
        %824 = vmatprep.subr.bf16.mxu0 %v514
        %825 = vmatpush1.bf16.msra.mxu0 %v513
        %826 = vmatprep.subr.bf16.mxu0 %v518
        %827 = vmatpush1.bf16.msra.mxu0 %v517
        %828 = vmatprep.subr.bf16.mxu0 %v522
        %829 = vmatpush1.bf16.msra.mxu0 %v521
        %830 = vmatprep.subr.bf16.mxu0 %v526
        %831 = vmatpush1.bf16.msra.mxu0 %v525
        %832 = vmatprep.subr.bf16.mxu0 %v530
        %833 = vmatpush1.bf16.msra.mxu0 %v529
        %834 = vmatprep.subr.bf16.mxu0 %v534
        %835 = vmatpush1.bf16.msra.mxu0 %v533
        %836 = vmatprep.mubr.bf16.mxu0 %v278
        %837 = vmatmul.mubr.bf16.gmra.mrb[0].mxu0 %v277
        %v838 = vpop.f32.mrb[0].mxu0
        %v839 = vadd.f32 0.0, %v838
        %v840 = vpop.f32.mrb[0].mxu0
        %v841 = vadd.f32 0.0, %v840
        %v842 = vpop.f32.mrb[0].mxu0
        %v843 = vpop.f32.mrb[0].mxu0
        %844 = vdwg.mxu0
        %v845 = vadd.f32 %v716, %v798
        %v846 = vadd.f32 %v718, %v800
        %v847 = vadd.f32 %v757, %v839
        %v848 = vadd.f32 %v759, %v841
        %849 = vst [vmem:[%s196] sm:$0xff] %v845
        %850 = vst [vmem:[%s196 + $0x8] sm:$0xff] %v846
        %851 = vst [vmem:[%s196 + $0x10] sm:$0xff] %v847
        %852 = vst [vmem:[%s196 + $0x18] sm:$0xff] %v848
        %s853 = sand.u32 %s94, 1
        %s854 = scalar_lea.sflag [#allocation4], %s853
        %s855 = sand.u32 %s94, 1
        %s856 = smul.addr %s855, 32
        %s857 = scalar_lea.vmem [#allocation7], %s856
        // Predicated region
        $region37: #{tpu_custom_call.1} parent=27 // pred_check
          %p858 = pneg %p104
        $region38: #{tpu_custom_call.1} parent=27 // pred_check_branch
          %860 = sbr.rel (%p858) target = $region40
        $region39: #{tpu_custom_call.1} parent=27 // pred_region
          %s861 = smul.u32 4, %s25
          %s863 = ssub.s32 512, 512
          %864 = vsyncadd %s854, %s863
          %s865 = smul.addr %s24, 8
          %s866 = sadd.s32 %s861, %s865
          %s867 = smul.addr %s866, 128
          %s868 = scalar_lea.hbm %s2, %s867
          %s870 = sshll.u32 %s857, 4
          %s871 = int_to_ptr.vmem [resolvable:$true] %s870
          %873 = dma.vmem_to_hbm [thread:$0]  %s871, 512, %s868, %s854
        $region40: #{tpu_custom_call.1} parent=27 // pred_fallthru
          _
      $region28: #{tpu_custom_call.1} parent=5 // pred_fallthru
        _
      %p874 = scmp.le.s32.totalorder 2, %s15
      // Predicated region
      $region41: #{tpu_custom_call.1} parent=5 // pred_check
        %p875 = pneg %p874
      $region42: #{tpu_custom_call.1} parent=5 // pred_check_branch
        %877 = sbr.rel (%p875) target = $region44
      $region43: #{tpu_custom_call.1} parent=5 // pred_region
        %s878 = ssub.s32 %s15, 2
        // Predicated region
        $region45: #{tpu_custom_call.1} parent=43 // pred_check
          %p879 = pneg %p110
        $region46: #{tpu_custom_call.1} parent=43 // pred_check_branch
          %881 = sbr.rel (%p879) target = $region48
        $region47: #{tpu_custom_call.1} parent=43 // pred_region
          %s882 = sand.u32 %s95, 1
          %s883 = scalar_lea.sflag [#allocation4], %s882
          %s884 = sand.u32 %s95, 1
          %s885 = smul.addr %s884, 32
          %s886 = scalar_lea.vmem [#allocation7], %s885
          %887 = dma.done %s883, 512
        $region48: #{tpu_custom_call.1} parent=43 // pred_fallthru
          _
      $region44: #{tpu_custom_call.1} parent=5 // pred_fallthru
        _
    $region6: #{tpu_custom_call.1} parent=1 // loop_footer
      %s19 = sadd.s32 1, %s15
    $region7: #{tpu_custom_call.1} parent=1 // loop_footer_branch
      %14 = sbr.rel target = $region3
    $region8: #{tpu_custom_call.1} parent=1 // loop_exit
      _
    %888 = vsyncpa [#allocation3], 1
    %s889 = scalar_lea.sflag [#allocation3], 1
    %890 = vsyncpa %s889, 1
    %891 = vsyncpa [#allocation6], 1
    %s892 = scalar_lea.sflag [#allocation6], 1
    %893 = vsyncpa %s892, 1
    %894 = vsyncpa [#allocation4], 1
    %s895 = scalar_lea.sflag [#allocation4], 1
    %896 = vsyncpa %s895, 1

</llo_original>
